<compile_context>
chip_gen: v5e
topology: v5e:2x2
jax: 0.10.0
libtpu: 0.0.40
codegen_flags: <defaults>
</compile_context>

<pallas_src>
import functools

import jax
import jax.numpy as jnp
from jax.experimental import pallas as pl

LANE = 128


# ----------------------------------------------------------------------------
# Fused Pallas kernel: L x GCN -> masked max-pool -> Linear -> ReLU -> Linear
# ----------------------------------------------------------------------------
def make_fused_kernel(layer_num, batch, num_nodes, hidden_dim, dmax):
    def kernel(adj_ref, x_ref, negm_ref, gw_ref, gb_ref,
               w1_ref, b1_ref, w2_ref, b2_ref, o_ref):
        bn = batch * num_nodes
        adj = adj_ref[...]                        # (B*N, B*N) bf16, block-diagonal
        h_in = x_ref[...]                         # (B*N, Dmax) bf16

        # ---- GCN stack: h stays flat (B*N, Dh) and resident in VMEM/vregs ----
        h = None
        for i in range(layer_num):                # static unroll
            w = gw_ref[i]                         # (Dmax, Dh) bf16  (static slice, free)
            b = gb_ref[i]                         # (1, Dh)   f32
            xw = jnp.dot(h_in, w,
                         preferred_element_type=jnp.float32)          # (B*N, Dh) f32
            h = jnp.dot(adj, xw.astype(jnp.bfloat16),
                        preferred_element_type=jnp.float32) + b       # (B*N, Dh) f32
            if i < layer_num - 1:
                h = jnp.maximum(h, 0.0)
                h_in = h.astype(jnp.bfloat16)
                if hidden_dim < dmax:             # only when glove_dim > hidden_dim
                    h_in = jnp.concatenate(
                        [h_in, jnp.zeros((bn, dmax - hidden_dim), jnp.bfloat16)],
                        axis=-1)

        # ---- Masked max-pool over nodes (additive -1e30 mask for padding) ----
        negm = negm_ref[...]                      # (B*N, 1) f32: 0 real / -1e30 pad
        hm = h + negm                             # lane-splat VPU add, no relayout
        pooled = jnp.max(hm.reshape(batch, num_nodes, hidden_dim), axis=1)  # (B, Dh)

        # ---- MLP head, batched over B ----------------------------------------
        y = jnp.dot(pooled.astype(jnp.bfloat16), w1_ref[...],
                    preferred_element_type=jnp.float32)                # (B, 128)
        y = jnp.maximum(y + b1_ref[...], 0.0)
        logits = jnp.dot(y.astype(jnp.bfloat16), w2_ref[...],
                         preferred_element_type=jnp.float32)           # (B, Tpad)
        o_ref[...] = logits + b2_ref[...]         # lane-dense 128-wide store

    return kernel


def fused_forward(adj_bd, x_flat, neg_mask, gw, gb, w1, b1, w2p, b2p,
                  *, batch, num_nodes, hidden_dim, layer_num, dmax):
    t_pad = w2p.shape[-1]
    # Grid-less: one dispatch, every operand VMEM-resident at these shapes.
    return pl.pallas_call(
        make_fused_kernel(layer_num, batch, num_nodes, hidden_dim, dmax),
        out_shape=jax.ShapeDtypeStruct((batch, t_pad), jnp.float32),
    )(adj_bd, x_flat, neg_mask, gw, gb, w1, b1, w2p, b2p)


# ----------------------------------------------------------------------------
# Glue (edge lists -> block-diagonal normalized adjacency, parameter init)
# ----------------------------------------------------------------------------
def build_norm_adj_blockdiag(edge_list, num_nodes):
    """edge_list [B, E, 2] int32 -> block-diagonal sym-normalized adjacency [B*N, B*N].

    One-hot / matmul formulation: no scatters in the wrapper jit.
    """
    B, E, _ = edge_list.shape
    bn = B * num_nodes
    offs = (jnp.arange(B, dtype=edge_list.dtype) * num_nodes)[:, None]
    src = (edge_list[:, :, 0] + offs).reshape(B * E)
    dst = (edge_list[:, :, 1] + offs).reshape(B * E)
    src_oh = jax.nn.one_hot(src, bn, dtype=jnp.float32)     # (B*E, B*N)
    dst_oh = jax.nn.one_hot(dst, bn, dtype=jnp.float32)
    a = src_oh.T @ dst_oh                                    # edge counts (block-diag)
    a = jnp.minimum(a + a.T, 1.0)                            # undirected, dedup
    a = jnp.minimum(a + jnp.eye(bn, dtype=jnp.float32), 1.0)  # self loops
    deg = a.sum(axis=1)
    dinv = jax.lax.rsqrt(jnp.maximum(deg, 1e-12))
    return a * dinv[:, None] * dinv[None, :]


def init_params(key, glove_dim, hidden_dim, layer_num, num_types):
    """Returns device-ready params: stacked GCN weights, padded lane-dense head, bf16 MXU operands."""
    keys = jax.random.split(key, 2 * layer_num + 4)
    dmax = max(glove_dim, hidden_dim)
    gw_list, gb_list = [], []
    din = glove_dim
    for i in range(layer_num):
        scale = 1.0 / jnp.sqrt(jnp.float32(din))
        w = jax.random.normal(keys[2 * i], (din, hidden_dim), jnp.float32) * scale
        b = jax.random.normal(keys[2 * i + 1], (1, hidden_dim), jnp.float32) * 0.01
        gw_list.append(jnp.pad(w, ((0, dmax - din), (0, 0))))   # zero-pad rows to Dmax
        gb_list.append(b)
        din = hidden_dim
    gw = jnp.stack(gw_list).astype(jnp.bfloat16)                 # (L, Dmax, Dh) bf16
    gb = jnp.stack(gb_list)                                      # (L, 1, Dh)    f32

    w1 = (jax.random.normal(keys[-4], (hidden_dim, 128), jnp.float32)
          / jnp.sqrt(jnp.float32(hidden_dim))).astype(jnp.bfloat16)
    b1 = jax.random.normal(keys[-3], (1, 128), jnp.float32) * 0.01

    t_pad = ((num_types + LANE - 1) // LANE) * LANE
    w2 = jax.random.normal(keys[-2], (128, num_types), jnp.float32) / jnp.sqrt(128.0)
    b2 = jax.random.normal(keys[-1], (1, num_types), jnp.float32) * 0.01
    w2p = jnp.pad(w2, ((0, 0), (0, t_pad - num_types))).astype(jnp.bfloat16)
    b2p = jnp.pad(b2, ((0, 0), (0, t_pad - num_types)))
    return dict(gcn_w=gw, gcn_b=gb, w1=w1, b1=b1, w2=w2p, b2=b2p)


def graph_classifier_forward(params, ques_features, ques_edge_list, ques_graph_mask,
                             *, num_types):
    B, N, glove_dim = ques_features.shape
    layer_num, dmax, hidden_dim = params["gcn_w"].shape

    adj_bd = build_norm_adj_blockdiag(ques_edge_list, N).astype(jnp.bfloat16)  # (B*N, B*N)

    x_flat = ques_features.reshape(B * N, glove_dim)
    if glove_dim < dmax:
        x_flat = jnp.pad(x_flat, ((0, 0), (0, dmax - glove_dim)))
    x_flat = x_flat.astype(jnp.bfloat16)                                        # (B*N, Dmax)

    # Additive mask: 0.0 for real nodes, -1e30 for padded nodes, pre-shaped (B*N, 1).
    neg_mask = ((ques_graph_mask.astype(jnp.float32) - 1.0) * 1e30).reshape(B * N, 1)

    logits_pad = fused_forward(adj_bd, x_flat, neg_mask,
                               params["gcn_w"], params["gcn_b"],
                               params["w1"], params["b1"],
                               params["w2"], params["b2"],
                               batch=B, num_nodes=N, hidden_dim=hidden_dim,
                               layer_num=layer_num, dmax=dmax)                  # (B, Tpad)
    return logits_pad[:, :num_types]                                            # (B, num_types)


# ----------------------------------------------------------------------------
# Main
# ----------------------------------------------------------------------------
if __name__ == "__main__":
    B, N, E = 2, 8, 12
    glove_dim, hidden_dim, layer_num, num_types = 32, 32, 2, 8

    key = jax.random.PRNGKey(0)
    k_feat, k_edge, k_param = jax.random.split(key, 3)

    ques_features = jax.random.normal(k_feat, (B, N, glove_dim), jnp.float32)
    # first graph uses all 8 nodes, second uses 6 (rest is padding)
    ques_graph_mask = jnp.array(
        [[1, 1, 1, 1, 1, 1, 1, 1],
         [1, 1, 1, 1, 1, 1, 0, 0]], dtype=jnp.int32)
    # keep edges within each graph's real nodes (PyG-style batching: no edges
    # touch padded nodes)
    valid_counts = ques_graph_mask.sum(axis=1).astype(jnp.int32)      # [8, 6]
    raw_edges = jax.random.randint(k_edge, (B, E, 2), 0, N, jnp.int32)
    ques_edge_list = raw_edges % valid_counts[:, None, None]

    params = init_params(k_param, glove_dim, hidden_dim, layer_num, num_types)

    fwd = jax.jit(functools.partial(graph_classifier_forward, num_types=num_types))
    out = fwd(params, ques_features, ques_edge_list, ques_graph_mask)
    out = jax.block_until_ready(out)
    assert out.shape == (B, num_types), out.shape
    print("KERNEL_OK")
</pallas_src>

<mosaic_0001>
module attributes {stable_mosaic.version = 11 : i64} {
  func.func @kernel(%arg0: memref<16x16xbf16, #tpu.memory_space<vmem>>, %arg1: memref<16x32xbf16, #tpu.memory_space<vmem>>, %arg2: memref<16x1xf32, #tpu.memory_space<vmem>>, %arg3: memref<2x32x32xbf16, #tpu.memory_space<vmem>>, %arg4: memref<2x1x32xf32, #tpu.memory_space<vmem>>, %arg5: memref<32x128xbf16, #tpu.memory_space<vmem>>, %arg6: memref<1x128xf32, #tpu.memory_space<vmem>>, %arg7: memref<128x128xbf16, #tpu.memory_space<vmem>>, %arg8: memref<1x128xf32, #tpu.memory_space<vmem>>, %arg9: memref<2x128xf32, #tpu.memory_space<vmem>>) attributes {dimension_semantics = [], scalar_prefetch = 0 : i64, scratch_operands = 0 : i64, tpu.core_type = #tpu.core_type<tc>} {
    %c0 = arith.constant 0 : index
    %c0_0 = arith.constant 0 : index
    %0 = vector.load %arg0[%c0, %c0_0] : memref<16x16xbf16, #tpu.memory_space<vmem>>, vector<16x16xbf16>
    %c0_1 = arith.constant 0 : index
    %c0_2 = arith.constant 0 : index
    %1 = vector.load %arg1[%c0_1, %c0_2] : memref<16x32xbf16, #tpu.memory_space<vmem>>, vector<16x32xbf16>
    %c0_3 = arith.constant 0 : index
    %c0_4 = arith.constant 0 : index
    %c0_5 = arith.constant 0 : index
    %2 = vector.load %arg3[%c0_3, %c0_4, %c0_5] : memref<2x32x32xbf16, #tpu.memory_space<vmem>>, vector<1x32x32xbf16>
    %3 = vector.shape_cast %2 : vector<1x32x32xbf16> to vector<32x32xbf16>
    %c0_6 = arith.constant 0 : index
    %c0_7 = arith.constant 0 : index
    %c0_8 = arith.constant 0 : index
    %4 = vector.load %arg4[%c0_6, %c0_7, %c0_8] : memref<2x1x32xf32, #tpu.memory_space<vmem>>, vector<1x1x32xf32>
    %5 = vector.shape_cast %4 : vector<1x1x32xf32> to vector<1x32xf32>
    %cst = arith.constant dense<0.000000e+00> : vector<16x32xf32>
    %6 = tpu.matmul %1, %3, %cst {dimension_numbers = #tpu.dot_dimension_numbers<[1], [0], [0], [1], [0, 0, 1, 1], [], []>} : vector<16x32xbf16>, vector<32x32xbf16>, vector<16x32xf32> -> vector<16x32xf32>
    %7 = arith.truncf %6 : vector<16x32xf32> to vector<16x32xbf16>
    %cst_9 = arith.constant dense<0.000000e+00> : vector<16x32xf32>
    %8 = tpu.matmul %0, %7, %cst_9 {dimension_numbers = #tpu.dot_dimension_numbers<[1], [0], [0], [1], [0, 0, 1, 1], [], []>} : vector<16x16xbf16>, vector<16x32xbf16>, vector<16x32xf32> -> vector<16x32xf32>
    %9 = vector.broadcast %5 : vector<1x32xf32> to vector<16x32xf32>
    %10 = arith.addf %8, %9 : vector<16x32xf32>
    %cst_10 = arith.constant 0.000000e+00 : f32
    %11 = vector.broadcast %cst_10 : f32 to vector<16x32xf32>
    %12 = arith.maximumf %10, %11 : vector<16x32xf32>
    %13 = arith.truncf %12 : vector<16x32xf32> to vector<16x32xbf16>
    %c1 = arith.constant 1 : index
    %c0_11 = arith.constant 0 : index
    %c0_12 = arith.constant 0 : index
    %14 = vector.load %arg3[%c1, %c0_11, %c0_12] : memref<2x32x32xbf16, #tpu.memory_space<vmem>>, vector<1x32x32xbf16>
    %15 = vector.shape_cast %14 : vector<1x32x32xbf16> to vector<32x32xbf16>
    %c1_13 = arith.constant 1 : index
    %c0_14 = arith.constant 0 : index
    %c0_15 = arith.constant 0 : index
    %16 = vector.load %arg4[%c1_13, %c0_14, %c0_15] : memref<2x1x32xf32, #tpu.memory_space<vmem>>, vector<1x1x32xf32>
    %17 = vector.shape_cast %16 : vector<1x1x32xf32> to vector<1x32xf32>
    %cst_16 = arith.constant dense<0.000000e+00> : vector<16x32xf32>
    %18 = tpu.matmul %13, %15, %cst_16 {dimension_numbers = #tpu.dot_dimension_numbers<[1], [0], [0], [1], [0, 0, 1, 1], [], []>} : vector<16x32xbf16>, vector<32x32xbf16>, vector<16x32xf32> -> vector<16x32xf32>
    %19 = arith.truncf %18 : vector<16x32xf32> to vector<16x32xbf16>
    %cst_17 = arith.constant dense<0.000000e+00> : vector<16x32xf32>
    %20 = tpu.matmul %0, %19, %cst_17 {dimension_numbers = #tpu.dot_dimension_numbers<[1], [0], [0], [1], [0, 0, 1, 1], [], []>} : vector<16x16xbf16>, vector<16x32xbf16>, vector<16x32xf32> -> vector<16x32xf32>
    %21 = vector.broadcast %17 : vector<1x32xf32> to vector<16x32xf32>
    %22 = arith.addf %20, %21 : vector<16x32xf32>
    %c0_18 = arith.constant 0 : index
    %c0_19 = arith.constant 0 : index
    %23 = vector.load %arg2[%c0_18, %c0_19] : memref<16x1xf32, #tpu.memory_space<vmem>>, vector<16x1xf32>
    %24 = vector.broadcast %23 : vector<16x1xf32> to vector<16x32xf32>
    %25 = arith.addf %22, %24 : vector<16x32xf32>
    %26 = vector.shape_cast %25 : vector<16x32xf32> to vector<2x8x32xf32>
    %cst_20 = arith.constant dense<0xFF800000> : vector<2x32xf32>
    %27 = vector.multi_reduction <maximumf>, %26, %cst_20 [1] : vector<2x8x32xf32> to vector<2x32xf32>
    %28 = arith.truncf %27 : vector<2x32xf32> to vector<2x32xbf16>
    %c0_21 = arith.constant 0 : index
    %c0_22 = arith.constant 0 : index
    %29 = vector.load %arg5[%c0_21, %c0_22] : memref<32x128xbf16, #tpu.memory_space<vmem>>, vector<32x128xbf16>
    %cst_23 = arith.constant dense<0.000000e+00> : vector<2x128xf32>
    %30 = tpu.matmul %28, %29, %cst_23 {dimension_numbers = #tpu.dot_dimension_numbers<[1], [0], [0], [1], [0, 0, 1, 1], [], []>} : vector<2x32xbf16>, vector<32x128xbf16>, vector<2x128xf32> -> vector<2x128xf32>
    %c0_24 = arith.constant 0 : index
    %c0_25 = arith.constant 0 : index
    %31 = vector.load %arg6[%c0_24, %c0_25] : memref<1x128xf32, #tpu.memory_space<vmem>>, vector<1x128xf32>
    %32 = vector.broadcast %31 : vector<1x128xf32> to vector<2x128xf32>
    %33 = arith.addf %30, %32 : vector<2x128xf32>
    %cst_26 = arith.constant 0.000000e+00 : f32
    %34 = vector.broadcast %cst_26 : f32 to vector<2x128xf32>
    %35 = arith.maximumf %33, %34 : vector<2x128xf32>
    %36 = arith.truncf %35 : vector<2x128xf32> to vector<2x128xbf16>
    %c0_27 = arith.constant 0 : index
    %c0_28 = arith.constant 0 : index
    %37 = vector.load %arg7[%c0_27, %c0_28] : memref<128x128xbf16, #tpu.memory_space<vmem>>, vector<128x128xbf16>
    %cst_29 = arith.constant dense<0.000000e+00> : vector<2x128xf32>
    %38 = tpu.matmul %36, %37, %cst_29 {dimension_numbers = #tpu.dot_dimension_numbers<[1], [0], [0], [1], [0, 0, 1, 1], [], []>} : vector<2x128xbf16>, vector<128x128xbf16>, vector<2x128xf32> -> vector<2x128xf32>
    %c0_30 = arith.constant 0 : index
    %c0_31 = arith.constant 0 : index
    %39 = vector.load %arg8[%c0_30, %c0_31] : memref<1x128xf32, #tpu.memory_space<vmem>>, vector<1x128xf32>
    %40 = vector.broadcast %39 : vector<1x128xf32> to vector<2x128xf32>
    %41 = arith.addf %38, %40 : vector<2x128xf32>
    %c0_32 = arith.constant 0 : index
    %c0_33 = arith.constant 0 : index
    %42 = vector.load %arg9[%c0_32, %c0_33] : memref<2x128xf32, #tpu.memory_space<vmem>>, vector<2x128xf32>
    tpu.vector_store %arg9[%c0_32, %c0_33], %41 {strides = array<i32>} : memref<2x128xf32, #tpu.memory_space<vmem>>, vector<2x128xf32>,
    return
  }
}

</mosaic_0001>

<llo_original>
// kernel: graph_classifier_forward.1
$region0: #{graph_classifier_forward.1}
  #allocation0 [shape = 'u32[]', space=smem, size = 0x4, offset = 0x4, fixed_abs, tag = 'smem constant byte address 0x4 - core index']
  #allocation1 [shape = 'u32[72,128]{1,0:T(1,128)}', space=vmem, size = 0x9000, scoped, tag = 'internal scratch']
  %s0 = inlined_call_operand.vmem [shape: bf16[16,16], index: 0, kind: input, shape index: {}]
  %s1 = inlined_call_operand.vmem [shape: bf16[16,32], index: 1, kind: input, shape index: {}]
  %s2 = inlined_call_operand.vmem [shape: f32[16,1], index: 2, kind: input, shape index: {}]
  %s3 = inlined_call_operand.vmem [shape: bf16[2,32,32], index: 3, kind: input, shape index: {}]
  %s4 = inlined_call_operand.vmem [shape: f32[2,1,32], index: 4, kind: input, shape index: {}]
  %s5 = inlined_call_operand.vmem [shape: bf16[32,128], index: 5, kind: input, shape index: {}]
  %s6 = inlined_call_operand.vmem [shape: f32[1,128], index: 6, kind: input, shape index: {}]
  %s7 = inlined_call_operand.vmem [shape: bf16[128,128], index: 7, kind: input, shape index: {}]
  %s8 = inlined_call_operand.vmem [shape: f32[1,128], index: 8, kind: input, shape index: {}]
  %s9 = inlined_call_operand.hbm [shape: f32[2,128], index: 9, kind: output, shape index: {}]
  %s10 = sld [smem:[#allocation0]]
  $region46: #{graph_classifier_forward.1} parent=0
    _
  %s12 = ssub.s32 1, %s10
  %s13 = scalar_select 0, %s12, %s10
  $region1: #{graph_classifier_forward.1} parent=0
    #allocation2 [shape = 'u8[1024]{0}', space=vmem, size = 0x400, scoped, tag = 'output window, operand 0, single buffered']
    #allocation3 [shape = 's32[1]{0}', space=sflag, size = 0x4, scoped, tag = 'scoped memory for graph_classifier_forward.1']
    %14 = vsyncpa [#allocation3], 0
    // Predicated region
    $region2: #{graph_classifier_forward.1} parent=1 // pred_check
      _
    $region3: #{graph_classifier_forward.1} parent=1 // pred_check_branch
      %16 = sbr.rel (0) target = $region5
    $region4: #{graph_classifier_forward.1} parent=1 // pred_region
      _
    $region5: #{graph_classifier_forward.1} parent=1 // pred_fallthru
      _
    // Predicated region
    $region6: #{graph_classifier_forward.1} parent=1 // pred_check
      _
    $region7: #{graph_classifier_forward.1} parent=1 // pred_check_branch
      %18 = sbr.rel (0) target = $region9
    $region8: #{graph_classifier_forward.1} parent=1 // pred_region
      _
    $region9: #{graph_classifier_forward.1} parent=1 // pred_fallthru
      _
    // Predicated region
    $region10: #{graph_classifier_forward.1} parent=1 // pred_check
      _
    $region11: #{graph_classifier_forward.1} parent=1 // pred_check_branch
      %20 = sbr.rel (0) target = $region13
    $region12: #{graph_classifier_forward.1} parent=1 // pred_region
      _
    $region13: #{graph_classifier_forward.1} parent=1 // pred_fallthru
      _
    // Predicated region
    $region14: #{graph_classifier_forward.1} parent=1 // pred_check
      _
    $region15: #{graph_classifier_forward.1} parent=1 // pred_check_branch
      %22 = sbr.rel (0) target = $region17
    $region16: #{graph_classifier_forward.1} parent=1 // pred_region
      _
    $region17: #{graph_classifier_forward.1} parent=1 // pred_fallthru
      _
    // Predicated region
    $region18: #{graph_classifier_forward.1} parent=1 // pred_check
      _
    $region19: #{graph_classifier_forward.1} parent=1 // pred_check_branch
      %24 = sbr.rel (0) target = $region21
    $region20: #{graph_classifier_forward.1} parent=1 // pred_region
      _
    $region21: #{graph_classifier_forward.1} parent=1 // pred_fallthru
      _
    // Predicated region
    $region22: #{graph_classifier_forward.1} parent=1 // pred_check
      _
    $region23: #{graph_classifier_forward.1} parent=1 // pred_check_branch
      %26 = sbr.rel (0) target = $region25
    $region24: #{graph_classifier_forward.1} parent=1 // pred_region
      _
    $region25: #{graph_classifier_forward.1} parent=1 // pred_fallthru
      _
    // Predicated region
    $region26: #{graph_classifier_forward.1} parent=1 // pred_check
      _
    $region27: #{graph_classifier_forward.1} parent=1 // pred_check_branch
      %28 = sbr.rel (0) target = $region29
    $region28: #{graph_classifier_forward.1} parent=1 // pred_region
      _
    $region29: #{graph_classifier_forward.1} parent=1 // pred_fallthru
      _
    // Predicated region
    $region30: #{graph_classifier_forward.1} parent=1 // pred_check
      _
    $region31: #{graph_classifier_forward.1} parent=1 // pred_check_branch
      %30 = sbr.rel (0) target = $region33
    $region32: #{graph_classifier_forward.1} parent=1 // pred_region
      _
    $region33: #{graph_classifier_forward.1} parent=1 // pred_fallthru
      _
    // Predicated region
    $region34: #{graph_classifier_forward.1} parent=1 // pred_check
      _
    $region35: #{graph_classifier_forward.1} parent=1 // pred_check_branch
      %32 = sbr.rel (0) target = $region37
    $region36: #{graph_classifier_forward.1} parent=1 // pred_region
      _
    $region37: #{graph_classifier_forward.1} parent=1 // pred_fallthru
      _
    %v34 = vld [vmem:[%s0] sm:$0xf]
    %v35 = vld [vmem:[%s0 + $0x4] sm:$0xf]
    %v36 = vld [vmem:[%s1] sm:$0xf]
    %v37 = vld [vmem:[%s1 + $0x4] sm:$0xf]
    %v38 = vld [vmem:[%s3] sm:$0xf]
    %v39 = vld [vmem:[%s3 + $0x4] sm:$0xf]
    %v40 = vld [vmem:[%s3 + $0x8] sm:$0xf]
    %v41 = vld [vmem:[%s3 + $0xc] sm:$0xf]
    %v42 = vld [vmem:[%s4] sm:$0x1]
    %v45 = vunpack.c.l.b16 %v36
    %v46 = vunpack.c.l.b16 %v37
    %v47 = vpack.c.b16 %v46, %v45
    %v52 = vunpack.c.l.b16 %v38
    %v53 = vunpack.c.l.b16 %v39
    %v54 = vunpack.c.l.b16 %v40
    %v55 = vunpack.c.l.b16 %v41
    %v56 = vpack.c.b16 %v53, %v52
    %v57 = vpack.c.b16 %v55, %v54
    %vm60 = vcmask 261120
    %v62 = vsel %vm60, %v47, 0
    %64 = vmatpush.bf16.msra.mxu0 0
    %65 = vmatpush.bf16.msra.mxu0 0
    %66 = vmatpush.bf16.msra.mxu0 0
    %67 = vmatpush.bf16.msra.mxu0 0
    %68 = vmatpush.bf16.msra.mxu0 0
    %69 = vmatpush.bf16.msra.mxu0 0
    %70 = vmatpush.bf16.msra.mxu0 %v57
    %71 = vmatpush.bf16.msra.mxu0 %v56
    %72 = vmatmul.bf16.gmra.mxu0 %v62
    %v73 = vpop.f32.mrf.mxu0
    %v74 = vadd.f32 0.0, %v73
    %v75 = vpop.f32.mrf.mxu0
    %v76 = vadd.f32 0.0, %v75
    %77 = vdwg.mxu0
    %v78 = vpack.c.bf16 %v76, %v74
    %v80 = vperm.slane %v42, 0
    %v84 = vunpack.c.l.b16 %v34
    %v85 = vunpack.c.l.b16 %v35
    %v86 = vpack.c.b16 %v85, %v84
    %vm87 = vcmask 130048
    %v89 = vsel %vm87, %v86, 0
    %91 = vmatpush.bf16.msra.mxu0 0
    %92 = vmatpush.bf16.msra.mxu0 0
    %93 = vmatpush.bf16.msra.mxu0 0
    %94 = vmatpush.bf16.msra.mxu0 0
    %95 = vmatpush.bf16.msra.mxu0 0
    %96 = vmatpush.bf16.msra.mxu0 0
    %97 = vmatpush.bf16.msra.mxu0 0
    %98 = vmatpush.bf16.msra.mxu0 %v78
    %99 = vmatmul.bf16.gmra.mxu0 %v89
    %v100 = vpop.f32.mrf.mxu0
    %v101 = vadd.f32 %v80, %v100
    %v102 = vpop.f32.mrf.mxu0
    %v103 = vadd.f32 %v80, %v102
    %104 = vdwg.mxu0
    %v105 = vmax.f32 %v101, 0.0
    %v106 = vmax.f32 %v103, 0.0
    %v107 = vpack.c.bf16 %v106, %v105
    %s108 = scalar_lea.vmem %s3, 16
    %v109 = vld [vmem:[%s108] sm:$0xf]
    %v110 = vld [vmem:[%s108 + $0x4] sm:$0xf]
    %v111 = vld [vmem:[%s108 + $0x8] sm:$0xf]
    %v112 = vld [vmem:[%s108 + $0xc] sm:$0xf]
    %s113 = scalar_lea.vmem %s4, 1
    %v114 = vld [vmem:[%s113] sm:$0x1]
    %v119 = vunpack.c.l.b16 %v109
    %v120 = vunpack.c.l.b16 %v110
    %v121 = vunpack.c.l.b16 %v111
    %v122 = vunpack.c.l.b16 %v112
    %v123 = vpack.c.b16 %v120, %v119
    %v124 = vpack.c.b16 %v122, %v121
    %v128 = vsel %vm60, %v107, 0
    %130 = vmatpush.bf16.msra.mxu0 0
    %131 = vmatpush.bf16.msra.mxu0 0
    %132 = vmatpush.bf16.msra.mxu0 0
    %133 = vmatpush.bf16.msra.mxu0 0
    %134 = vmatpush.bf16.msra.mxu0 0
    %135 = vmatpush.bf16.msra.mxu0 0
    %136 = vmatpush.bf16.msra.mxu0 %v124
    %137 = vmatpush.bf16.msra.mxu0 %v123
    %138 = vmatmul.bf16.gmra.mxu0 %v128
    %v139 = vpop.f32.mrf.mxu0
    %v140 = vadd.f32 0.0, %v139
    %v141 = vpop.f32.mrf.mxu0
    %v142 = vadd.f32 0.0, %v141
    %143 = vdwg.mxu0
    %v144 = vpack.c.bf16 %v142, %v140
    %v146 = vperm.slane %v114, 0
    %148 = vmatpush.bf16.msra.mxu0 0
    %149 = vmatpush.bf16.msra.mxu0 0
    %150 = vmatpush.bf16.msra.mxu0 0
    %151 = vmatpush.bf16.msra.mxu0 0
    %152 = vmatpush.bf16.msra.mxu0 0
    %153 = vmatpush.bf16.msra.mxu0 0
    %154 = vmatpush.bf16.msra.mxu0 0
    %155 = vmatpush.bf16.msra.mxu0 %v144
    %156 = vmatmul.bf16.gmra.mxu0 %v89
    %v157 = vpop.f32.mrf.mxu0
    %v158 = vadd.f32 %v146, %v157
    %v159 = vpop.f32.mrf.mxu0
    %v160 = vadd.f32 %v146, %v159
    %161 = vdwg.mxu0
    %v162 = vld [vmem:[%s2] sm:$0xff]
    %v163 = vld [vmem:[%s2 + $0x8] sm:$0xff]
    %165 = vset.pattern.permute.xlu0 0
    %166 = vperm.xlu0 %165, %v162
    %v167 = vpop.permute.xlu0 %166
    %170 = vset.pattern.permute.xlu0 0
    %171 = vperm.xlu0 %170, %v163
    %v172 = vpop.permute.xlu0 %171
    %v174 = vadd.f32 %v158, %v167
    %v175 = vadd.f32 %v160, %v172
    %v176 = vsel %vm60, %v174, -inf
    %v177 = vrot.slane %v176, 4
    %v178 = vmax.f32 %v176, %v177
    %v179 = vrot.slane %v178, 2
    %v180 = vmax.f32 %v178, %v179
    %v181 = vrot.slane %v180, 1
    %v182 = vmax.f32 %v180, %v181
    %v183 = vsel %vm60, %v175, -inf
    %v184 = vrot.slane %v183, 4
    %v185 = vmax.f32 %v183, %v184
    %v186 = vrot.slane %v185, 2
    %v187 = vmax.f32 %v185, %v186
    %v188 = vrot.slane %v187, 1
    %v189 = vmax.f32 %v187, %v188
    %v190 = vpack.c.bf16 %v182, %v182
    %v191 = vpack.c.bf16 %v189, %v189
    %v192 = vld [vmem:[%s5] sm:$0xf]
    %v193 = vld [vmem:[%s5 + $0x4] sm:$0xf]
    %v194 = vld [vmem:[%s5 + $0x8] sm:$0xf]
    %v195 = vld [vmem:[%s5 + $0xc] sm:$0xf]
    %v196 = vld [vmem:[%s6] sm:$0x1]
    %v198 = vperm.slane %v196, 0
    %v202 = vunpack.c.l.b16 %v190
    %v203 = vunpack.c.l.b16 %v191
    %vm204 = vcmask 1041409
    %v205 = vsel %vm204, %v203, %v202
    %v206 = vpack.c.b16 %v205, %v205
    %v211 = vunpack.c.l.b16 %v192
    %v212 = vunpack.c.l.b16 %v193
    %v213 = vunpack.c.l.b16 %v194
    %v214 = vunpack.c.l.b16 %v195
    %v215 = vpack.c.b16 %v212, %v211
    %v216 = vpack.c.b16 %v214, %v213
    %v220 = vsel %vm60, %v206, 0
    %222 = vmatpush.bf16.msra.mxu0 0
    %223 = vmatpush.bf16.msra.mxu0 0
    %224 = vmatpush.bf16.msra.mxu0 0
    %225 = vmatpush.bf16.msra.mxu0 0
    %226 = vmatpush.bf16.msra.mxu0 0
    %227 = vmatpush.bf16.msra.mxu0 0
    %228 = vmatpush.bf16.msra.mxu0 %v216
    %229 = vmatpush.bf16.msra.mxu0 %v215
    %230 = vmatmul.bf16.gmra.mxu0 %v220
    %v231 = vpop.f32.mrf.mxu0
    %v232 = vadd.f32 %v198, %v231
    %v233 = vpop.f32.mrf.mxu0
    %234 = vdwg.mxu0
    %v235 = vmax.f32 %v232, 0.0
    %v236 = vpack.c.bf16 %v235, %v235
    %v237 = vld [vmem:[%s7] sm:$0xf]
    %v238 = vld [vmem:[%s7 + $0x4] sm:$0xf]
    %v239 = vld [vmem:[%s7 + $0x8] sm:$0xf]
    %v240 = vld [vmem:[%s7 + $0xc] sm:$0xf]
    %v241 = vld [vmem:[%s7 + $0x10] sm:$0xf]
    %v242 = vld [vmem:[%s7 + $0x14] sm:$0xf]
    %v243 = vld [vmem:[%s7 + $0x18] sm:$0xf]
    %v244 = vld [vmem:[%s7 + $0x1c] sm:$0xf]
    %v245 = vld [vmem:[%s7 + $0x20] sm:$0xf]
    %v246 = vld [vmem:[%s7 + $0x24] sm:$0xf]
    %v247 = vld [vmem:[%s7 + $0x28] sm:$0xf]
    %v248 = vld [vmem:[%s7 + $0x2c] sm:$0xf]
    %v249 = vld [vmem:[%s7 + $0x30] sm:$0xf]
    %v250 = vld [vmem:[%s7 + $0x34] sm:$0xf]
    %v251 = vld [vmem:[%s7 + $0x38] sm:$0xf]
    %v252 = vld [vmem:[%s7 + $0x3c] sm:$0xf]
    %v253 = vld [vmem:[%s8] sm:$0x1]
    %v255 = vperm.slane %v253, 0
    %v273 = vunpack.c.l.b16 %v237
    %v274 = vunpack.c.l.b16 %v238
    %v275 = vunpack.c.l.b16 %v239
    %v276 = vunpack.c.l.b16 %v240
    %v277 = vunpack.c.l.b16 %v241
    %v278 = vunpack.c.l.b16 %v242
    %v279 = vunpack.c.l.b16 %v243
    %v280 = vunpack.c.l.b16 %v244
    %v281 = vunpack.c.l.b16 %v245
    %v282 = vunpack.c.l.b16 %v246
    %v283 = vunpack.c.l.b16 %v247
    %v284 = vunpack.c.l.b16 %v248
    %v285 = vunpack.c.l.b16 %v249
    %v286 = vunpack.c.l.b16 %v250
    %v287 = vunpack.c.l.b16 %v251
    %v288 = vunpack.c.l.b16 %v252
    %v289 = vpack.c.b16 %v274, %v273
    %v290 = vpack.c.b16 %v276, %v275
    %v291 = vpack.c.b16 %v278, %v277
    %v292 = vpack.c.b16 %v280, %v279
    %v293 = vpack.c.b16 %v282, %v281
    %v294 = vpack.c.b16 %v284, %v283
    %v295 = vpack.c.b16 %v286, %v285
    %v296 = vpack.c.b16 %v288, %v287
    %305 = vmatpush.bf16.msra.mxu0 %v296
    %306 = vmatpush.bf16.msra.mxu0 %v295
    %307 = vmatpush.bf16.msra.mxu0 %v294
    %308 = vmatpush.bf16.msra.mxu0 %v293
    %309 = vmatpush.bf16.msra.mxu0 %v292
    %310 = vmatpush.bf16.msra.mxu0 %v291
    %311 = vmatpush.bf16.msra.mxu0 %v290
    %312 = vmatpush.bf16.msra.mxu0 %v289
    %313 = vmatmul.bf16.gmra.mxu0 %v236
    %v314 = vpop.f32.mrf.mxu0
    %v315 = vadd.f32 %v255, %v314
    %v316 = vpop.f32.mrf.mxu0
    %317 = vdwg.mxu0
    %318 = vst [vmem:[#allocation2] sm:$0x3] %v315
    // Predicated region
    $region38: #{graph_classifier_forward.1} parent=1 // pred_check
      _
    $region39: #{graph_classifier_forward.1} parent=1 // pred_check_branch
      %320 = sbr.rel (0) target = $region41
    $region40: #{graph_classifier_forward.1} parent=1 // pred_region
      %322 = vsyncadd [#allocation3], 0
      %s324 = sshll.u32 [#allocation2], 4
      %s325 = int_to_ptr.vmem [resolvable:$true] %s324
      %s326 = sshll.u32 %s9, 4
      %s327 = int_to_ptr.hbm [resolvable:$true] %s326
      %329 = dma.vmem_to_hbm [thread:$0]  %s325, 32, %s327, [#allocation3]
    $region41: #{graph_classifier_forward.1} parent=1 // pred_fallthru
      _
    // Predicated region
    $region42: #{graph_classifier_forward.1} parent=1 // pred_check
      _
    $region43: #{graph_classifier_forward.1} parent=1 // pred_check_branch
      %331 = sbr.rel (0) target = $region45
    $region44: #{graph_classifier_forward.1} parent=1 // pred_region
      %333 = dma.done [#allocation3], 32
    $region45: #{graph_classifier_forward.1} parent=1 // pred_fallthru
      _
    %334 = vsyncpa [#allocation3], 1

</llo_original>
